<compile_context>
chip_gen: v7x
topology: tpu7x:2x2x1
jax: 0.10.0
libtpu: 0.0.40
codegen_flags: <defaults>
</compile_context>

<pallas_src>
import functools

import jax
import jax.numpy as jnp
from jax.experimental import pallas as pl
from jax.experimental.pallas import tpu as pltpu


def _round_up(x, m):
    return ((x + m - 1) // m) * m


def _vmem_budget_bytes():
    """~80% of physical VMEM per core, conservative 64 MiB fallback."""
    try:
        cap = int(pltpu.get_tpu_info().vmem_capacity_bytes)
    except Exception:  # pragma: no cover - info query unavailable
        cap = 64 * 1024 * 1024
    return max(16 * 1024 * 1024, int(cap * 0.8))


# ----------------------------------------------------------------------------
# Kernels
# ----------------------------------------------------------------------------
def _ffn_resident_kernel(x_ref, w1_ref, w2_ref, wo_ref, o_ref, *, i_chunk):
    # x_ref:  (tile_m, H)    activation tile
    # w1_ref: (H, I)         ffn1 weight, canonical (K, N), VMEM-resident
    # w2_ref: (H, I)         ffn2 weight, canonical (K, N), VMEM-resident
    # wo_ref: (I, H)         o_proj weight, canonical (K, N), VMEM-resident
    # o_ref:  (tile_m, H)    output tile
    x = x_ref[...]
    inter_dim = w1_ref.shape[1]
    acc = jnp.zeros((x.shape[0], wo_ref.shape[1]), jnp.float32)
    # Static chunking of the intermediate dim bounds the live fp32 temps
    # (o1/o2/inter are (tile_m, i_chunk) instead of (tile_m, I)).
    for lo in range(0, inter_dim, i_chunk):
        sz = min(i_chunk, inter_dim - lo)
        w1c = w1_ref[:, lo:lo + sz]
        w2c = w2_ref[:, lo:lo + sz]
        o1 = jnp.dot(x, w1c, preferred_element_type=jnp.float32)
        o2 = jnp.dot(x, w2c, preferred_element_type=jnp.float32)
        inter = o1 * (o2 * jax.nn.sigmoid(o2))
        woc = wo_ref[lo:lo + sz, :]
        acc = acc + jnp.dot(inter.astype(x.dtype), woc,
                            preferred_element_type=jnp.float32)
    o_ref[...] = acc.astype(o_ref.dtype)


def _ffn_stream_kernel(x_ref, w1_ref, w2_ref, wo_ref, o_ref, acc_ref):
    # x_ref:   (tile_m, H)    activation tile (resident across the I axis)
    # w1_ref:  (H, tile_i)    ffn1 weight tile, canonical (K, N)
    # w2_ref:  (H, tile_i)    ffn2 weight tile, canonical (K, N)
    # wo_ref:  (tile_i, H)    o_proj weight tile, canonical (K, N)
    # o_ref:   (tile_m, H)    output tile (resident across the I axis)
    # acc_ref: (tile_m, H)    fp32 accumulator scratch
    i_idx = pl.program_id(1)

    @pl.when(i_idx == 0)
    def _():
        acc_ref[...] = jnp.zeros_like(acc_ref)

    x = x_ref[...]
    o1 = jnp.dot(x, w1_ref[...], preferred_element_type=jnp.float32)
    o2 = jnp.dot(x, w2_ref[...], preferred_element_type=jnp.float32)
    inter = o1 * (o2 * jax.nn.sigmoid(o2))
    acc_ref[...] += jnp.dot(inter.astype(x.dtype), wo_ref[...],
                            preferred_element_type=jnp.float32)

    @pl.when(i_idx == pl.num_programs(1) - 1)
    def _():
        o_ref[...] = acc_ref[...].astype(o_ref.dtype)


# ----------------------------------------------------------------------------
# Jitted implementation (layout change, padding, pallas_call)
# ----------------------------------------------------------------------------
@functools.partial(
    jax.jit,
    static_argnames=("tile_m", "tile_i", "resident", "i_chunk",
                     "m_pad", "i_pad", "vmem_limit"))
def _ndl_ffn_impl(x2d, w1, w2, wo, *, tile_m, tile_i, resident, i_chunk,
                  m_pad, i_pad, vmem_limit):
    M, H = x2d.shape
    I = w1.shape[0]
    itm = jnp.dtype(x2d.dtype).itemsize
    itw = jnp.dtype(w1.dtype).itemsize

    # One-time (per call, fused inside jit) layout change to canonical (K, N)
    # matmul layouts so the in-kernel dots never need an XLU transpose.
    w1t = w1.T            # (H, I)
    w2t = w2.T            # (H, I)
    wot = wo.T            # (I, H)

    if m_pad != M:
        x2d = jnp.pad(x2d, ((0, m_pad - M), (0, 0)))   # zero rows -> zero rows
    if i_pad != I:
        # Only the streaming path pads I; zero-padded intermediate features
        # contribute exactly zero to the output.
        w1t = jnp.pad(w1t, ((0, 0), (0, i_pad - I)))
        w2t = jnp.pad(w2t, ((0, 0), (0, i_pad - I)))
        wot = jnp.pad(wot, ((0, i_pad - I), (0, 0)))

    m_tiles = m_pad // tile_m

    if resident:
        grid = (m_tiles,)
        in_specs = [
            pl.BlockSpec((tile_m, H), lambda m: (m, 0)),     # x
            pl.BlockSpec((H, i_pad), lambda m: (0, 0)),      # w1 (resident)
            pl.BlockSpec((H, i_pad), lambda m: (0, 0)),      # w2 (resident)
            pl.BlockSpec((i_pad, H), lambda m: (0, 0)),      # wo (resident)
        ]
        out_specs = pl.BlockSpec((tile_m, H), lambda m: (m, 0))
        scratch = []
        kernel = functools.partial(_ffn_resident_kernel, i_chunk=i_chunk)
        dim_sem = ("parallel",)
        weight_bytes = 3 * H * i_pad * itw                   # each weight once
    else:
        i_tiles = i_pad // tile_i
        grid = (m_tiles, i_tiles)                            # reduction last
        in_specs = [
            pl.BlockSpec((tile_m, H), lambda m, i: (m, 0)),  # x
            pl.BlockSpec((H, tile_i), lambda m, i: (0, i)),  # w1
            pl.BlockSpec((H, tile_i), lambda m, i: (0, i)),  # w2
            pl.BlockSpec((tile_i, H), lambda m, i: (i, 0)),  # wo
        ]
        out_specs = pl.BlockSpec((tile_m, H), lambda m, i: (m, 0))
        scratch = [pltpu.VMEM((tile_m, H), jnp.float32)]
        kernel = _ffn_stream_kernel
        dim_sem = ("parallel", "arbitrary")
        weight_bytes = m_tiles * 3 * H * i_pad * itw         # re-streamed per M tile

    cost = pl.CostEstimate(
        flops=6 * m_pad * H * i_pad,                         # three MxHxI matmuls
        transcendentals=m_pad * i_pad,                       # sigmoid
        bytes_accessed=int(2 * m_pad * H * itm + weight_bytes),
    )

    return pl.pallas_call(
        kernel,
        out_shape=jax.ShapeDtypeStruct((m_pad, H), x2d.dtype),
        grid_spec=pltpu.PrefetchScalarGridSpec(
            num_scalar_prefetch=0,
            grid=grid,
            in_specs=in_specs,
            out_specs=out_specs,
            scratch_shapes=scratch,
        ),
        compiler_params=pltpu.CompilerParams(
            dimension_semantics=dim_sem,
            vmem_limit_bytes=int(vmem_limit)),
        cost_estimate=cost,
    )(x2d, w1t, w2t, wot)


# ----------------------------------------------------------------------------
# Public wrapper: tile / path selection
# ----------------------------------------------------------------------------
def ndl_ffn(x, w1, w2, wo, *, tile_m=None, tile_i=None):
    """NDLFFN forward: o_proj(ffn1_proj(x) * silu(ffn2_proj(x))).

    x:       (B, S, H)
    w1, w2:  (I, H)  PyTorch nn.Linear weight layout (out_features, in_features)
    wo:      (H, I)
    tile_i:  if given, forces the streaming (I-reduction) path with that tile.
    """
    B, S, H = x.shape
    I = w1.shape[0]
    M = B * S

    itm = jnp.dtype(x.dtype).itemsize
    itw = jnp.dtype(w1.dtype).itemsize
    budget = _vmem_budget_bytes()

    # ---- M tiling -----------------------------------------------------------
    # Bigger tiles => fewer grid steps and (in the streaming path) fewer weight
    # re-fetches.  Cap depends on the VMEM budget (v5e/v6e vs v7x).
    tile_m_cap = 1024 if budget >= 80 * 1024 * 1024 else 512
    if tile_m is None:
        tile_m = min(tile_m_cap, _round_up(M, 8))
    else:
        tile_m = max(8, _round_up(tile_m, 8))
    m_pad = _round_up(M, tile_m)
    # Keep >= 2 M tiles for megacore (v7x) sharding when M is large enough.
    if m_pad // tile_m == 1 and m_pad >= 256:
        tile_m = _round_up((m_pad + 1) // 2, 8)
        m_pad = _round_up(M, tile_m)

    # ---- path selection -----------------------------------------------------
    i_chunk = min(I, 512)                       # in-kernel fp32 temp bound
    resident_bytes = (2 * tile_m * H * itm      # x (double-buffered)
                      + 2 * 2 * H * I * itw     # w1, w2 (conservative 2 bufs)
                      + 2 * I * H * itw         # wo
                      + 2 * tile_m * H * itm    # out
                      + tile_m * H * 4          # fp32 accumulator
                      + 3 * tile_m * i_chunk * 4)
    resident = (tile_i is None) and (resident_bytes <= budget)

    if resident:
        i_pad = I                               # full-extent blocks; no padding
        tile_i_eff = 0                          # unused (cache key only)
    else:
        def fits(tm, ti):
            return (2 * tm * H * itm
                    + 2 * 2 * H * ti * itw      # w1, w2 tiles (double-buffered)
                    + 2 * ti * H * itw          # wo tile
                    + 2 * tm * H * itm
                    + tm * H * 4
                    + 3 * tm * ti * 4) <= budget

        if tile_i is not None:
            tile_i_eff = max(128, _round_up(tile_i, 128))
        else:
            tile_i_eff = 128
            for cand in (2048, 1024, 512, 256, 128):
                if cand <= _round_up(I, 128) and fits(tile_m, cand):
                    tile_i_eff = cand
                    break
        # If still too big, shrink tile_m until the working set fits.
        while not fits(tile_m, tile_i_eff) and tile_m > 8:
            tile_m = max(8, _round_up(tile_m // 2, 8))
        m_pad = _round_up(M, tile_m)
        i_pad = _round_up(I, tile_i_eff)

    x2d = x.reshape(M, H)
    out2d = _ndl_ffn_impl(
        x2d, w1, w2, wo,
        tile_m=tile_m, tile_i=tile_i_eff, resident=resident, i_chunk=i_chunk,
        m_pad=m_pad, i_pad=i_pad, vmem_limit=budget)
    if m_pad != M:
        out2d = out2d[:M]
    return out2d.reshape(B, S, H)


# ----------------------------------------------------------------------------
# Reference & tests
# ----------------------------------------------------------------------------
def _reference(x, w1, w2, wo):
    o1 = jnp.einsum("bsh,ih->bsi", x, w1)
    o2 = jnp.einsum("bsh,ih->bsi", x, w2)
    inter = o1 * (o2 * jax.nn.sigmoid(o2))
    return jnp.einsum("bsi,hi->bsh", inter, wo)


if __name__ == "__main__":
    key = jax.random.PRNGKey(0)

    # ---- test 1: module-scale shapes (hidden=32, intermediate=64) -----------
    # Exercises the weights-resident fast path.
    B, S, H, I = 2, 8, 32, 64
    kx, k1, k2, ko, key = jax.random.split(key, 5)
    x = jax.random.normal(kx, (B, S, H), dtype=jnp.float32)
    w1 = jax.random.normal(k1, (I, H), dtype=jnp.float32) * 0.05  # ffn1_proj.weight
    w2 = jax.random.normal(k2, (I, H), dtype=jnp.float32) * 0.05  # ffn2_proj.weight
    wo = jax.random.normal(ko, (H, I), dtype=jnp.float32) * 0.05  # o_proj.weight

    out = jax.block_until_ready(ndl_ffn(x, w1, w2, wo))
    ref = _reference(x, w1, w2, wo)
    assert out.shape == (B, S, H)
    assert jnp.allclose(out, ref, atol=1e-5, rtol=1e-5), "mismatch (test 1)"

    # ---- test 2: M padding (M=14) + forced streaming / I-reduction path -----
    B2, S2, H2, I2 = 2, 7, 128, 256
    kx, k1, k2, ko, key = jax.random.split(key, 5)
    x2 = jax.random.normal(kx, (B2, S2, H2), dtype=jnp.float32)
    w1b = jax.random.normal(k1, (I2, H2), dtype=jnp.float32) * 0.05
    w2b = jax.random.normal(k2, (I2, H2), dtype=jnp.float32) * 0.05
    wob = jax.random.normal(ko, (H2, I2), dtype=jnp.float32) * 0.05

    out2 = jax.block_until_ready(ndl_ffn(x2, w1b, w2b, wob, tile_i=128))
    ref2 = _reference(x2, w1b, w2b, wob)
    assert out2.shape == (B2, S2, H2)
    assert jnp.allclose(out2, ref2, atol=1e-4, rtol=1e-4), "mismatch (test 2)"

    print("KERNEL_OK")
</pallas_src>

<mosaic_0001>
module attributes {stable_mosaic.version = 11 : i64} {
  func.func @_ffn_resident_kernel(%arg0: i32, %arg1: memref<16x32xf32, #tpu.memory_space<vmem>>, %arg2: memref<32x64xf32, #tpu.memory_space<vmem>>, %arg3: memref<32x64xf32, #tpu.memory_space<vmem>>, %arg4: memref<64x32xf32, #tpu.memory_space<vmem>>, %arg5: memref<16x32xf32, #tpu.memory_space<vmem>>) attributes {dimension_semantics = [#tpu.dimension_semantics<parallel>], iteration_bounds = array<i64: 1>, scalar_prefetch = 0 : i64, scratch_operands = 0 : i64, tpu.core_type = #tpu.core_type<tc>, window_params = [{transform_indices = @transform_0, window_bounds = array<i64: 16, 32>}, {pipeline_mode = #tpu.pipeline_mode<synchronous>, transform_indices = @transform_1, window_bounds = array<i64: 32, 64>}, {pipeline_mode = #tpu.pipeline_mode<synchronous>, transform_indices = @transform_2, window_bounds = array<i64: 32, 64>}, {pipeline_mode = #tpu.pipeline_mode<synchronous>, transform_indices = @transform_3, window_bounds = array<i64: 64, 32>}, {transform_indices = @transform_4, window_bounds = array<i64: 16, 32>}]} {
    %c0 = arith.constant 0 : index
    %c0_0 = arith.constant 0 : index
    %0 = vector.load %arg1[%c0, %c0_0] : memref<16x32xf32, #tpu.memory_space<vmem>>, vector<16x32xf32>
    %cst = arith.constant 0.000000e+00 : f32
    %1 = vector.broadcast %cst : f32 to vector<16x32xf32>
    %c0_1 = arith.constant 0 : index
    %c0_2 = arith.constant 0 : index
    %2 = vector.load %arg2[%c0_1, %c0_2] : memref<32x64xf32, #tpu.memory_space<vmem>>, vector<32x64xf32>
    %c0_3 = arith.constant 0 : index
    %c0_4 = arith.constant 0 : index
    %3 = vector.load %arg3[%c0_3, %c0_4] : memref<32x64xf32, #tpu.memory_space<vmem>>, vector<32x64xf32>
    %cst_5 = arith.constant dense<0.000000e+00> : vector<16x64xf32>
    %4 = tpu.matmul %0, %2, %cst_5 {dimension_numbers = #tpu.dot_dimension_numbers<[1], [0], [0], [1], [0, 0, 1, 1], [], []>} : vector<16x32xf32>, vector<32x64xf32>, vector<16x64xf32> -> vector<16x64xf32>
    %cst_6 = arith.constant dense<0.000000e+00> : vector<16x64xf32>
    %5 = tpu.matmul %0, %3, %cst_6 {dimension_numbers = #tpu.dot_dimension_numbers<[1], [0], [0], [1], [0, 0, 1, 1], [], []>} : vector<16x32xf32>, vector<32x64xf32>, vector<16x64xf32> -> vector<16x64xf32>
    %6 = arith.negf %5 : vector<16x64xf32>
    %7 = math.exp %6 : vector<16x64xf32>
    %cst_7 = arith.constant 1.000000e+00 : f32
    %8 = vector.broadcast %cst_7 : f32 to vector<16x64xf32>
    %9 = arith.addf %8, %7 : vector<16x64xf32>
    %10 = arith.divf %8, %9 : vector<16x64xf32>
    %11 = arith.mulf %5, %10 : vector<16x64xf32>
    %12 = arith.mulf %4, %11 : vector<16x64xf32>
    %c0_8 = arith.constant 0 : index
    %c0_9 = arith.constant 0 : index
    %13 = vector.load %arg4[%c0_8, %c0_9] : memref<64x32xf32, #tpu.memory_space<vmem>>, vector<64x32xf32>
    %cst_10 = arith.constant dense<0.000000e+00> : vector<16x32xf32>
    %14 = tpu.matmul %12, %13, %cst_10 {dimension_numbers = #tpu.dot_dimension_numbers<[1], [0], [0], [1], [0, 0, 1, 1], [], []>} : vector<16x64xf32>, vector<64x32xf32>, vector<16x32xf32> -> vector<16x32xf32>
    %15 = arith.addf %1, %14 : vector<16x32xf32>
    %c0_11 = arith.constant 0 : index
    %c0_12 = arith.constant 0 : index
    %16 = vector.load %arg5[%c0_11, %c0_12] : memref<16x32xf32, #tpu.memory_space<vmem>>, vector<16x32xf32>
    tpu.vector_store %arg5[%c0_11, %c0_12], %15 {strides = array<i32>} : memref<16x32xf32, #tpu.memory_space<vmem>>, vector<16x32xf32>,
    return
  }
  func.func @transform_0(%arg0: i32) -> (i32, i32) {
    %c0_i32 = arith.constant 0 : i32
    %c0_i32_0 = arith.constant 0 : i32
    return %arg0, %c0_i32 : i32, i32
  }
  func.func @transform_1(%arg0: i32) -> (i32, i32) {
    %c0_i32 = arith.constant 0 : i32
    %c0_i32_0 = arith.constant 0 : i32
    %c0_i32_1 = arith.constant 0 : i32
    return %c0_i32, %c0_i32_0 : i32, i32
  }
  func.func @transform_2(%arg0: i32) -> (i32, i32) {
    %c0_i32 = arith.constant 0 : i32
    %c0_i32_0 = arith.constant 0 : i32
    %c0_i32_1 = arith.constant 0 : i32
    return %c0_i32, %c0_i32_0 : i32, i32
  }
  func.func @transform_3(%arg0: i32) -> (i32, i32) {
    %c0_i32 = arith.constant 0 : i32
    %c0_i32_0 = arith.constant 0 : i32
    %c0_i32_1 = arith.constant 0 : i32
    return %c0_i32, %c0_i32_0 : i32, i32
  }
  func.func @transform_4(%arg0: i32) -> (i32, i32) {
    %c0_i32 = arith.constant 0 : i32
    %c0_i32_0 = arith.constant 0 : i32
    return %arg0, %c0_i32 : i32, i32
  }
}

</mosaic_0001>

<llo_original>
// kernel: _ndl_ffn_impl.1
$region0: #{_ndl_ffn_impl.1}
  #allocation0 [shape = 'u32[]', space=smem, size = 0x4, offset = 0x4, fixed_abs, tag = 'smem constant byte address 0x4 - core index']
  #allocation1 [shape = 'u32[144,128]{1,0:T(1,128)}', space=vmem, size = 0x12000, scoped, tag = 'internal scratch']
  %s0 = inlined_call_operand.vmem [shape: f32[16,32], index: 0, kind: input, shape index: {}]
  %s1 = inlined_call_operand.vmem [shape: f32[32,64], index: 1, kind: input, shape index: {}]
  %s2 = inlined_call_operand.vmem [shape: f32[32,64], index: 2, kind: input, shape index: {}]
  %s3 = inlined_call_operand.vmem [shape: f32[64,32], index: 3, kind: input, shape index: {}]
  %s4 = inlined_call_operand.hbm [shape: f32[16,32], index: 4, kind: output, shape index: {}]
  %s5 = sld [smem:[#allocation0]]
  $region26: #{_ndl_ffn_impl.1} parent=0
    _
  %s7 = ssub.s32 1, %s5
  %s8 = scalar_select 0, %s7, %s5
  $region1: #{_ndl_ffn_impl.1} parent=0
    #allocation2 [shape = 'u8[8192]{0}', space=vmem, size = 0x2000, scoped, tag = 'output window, operand 0, single buffered']
    #allocation3 [shape = 's32[1]{0}', space=sflag, size = 0x4, scoped, tag = 'scoped memory for _ndl_ffn_impl.1']
    %9 = vsyncpa [#allocation3], 0
    // Predicated region
    $region2: #{_ndl_ffn_impl.1} parent=1 // pred_check
      _
    $region3: #{_ndl_ffn_impl.1} parent=1 // pred_check_branch
      %11 = sbr.rel (0) target = $region5
    $region4: #{_ndl_ffn_impl.1} parent=1 // pred_region
      _
    $region5: #{_ndl_ffn_impl.1} parent=1 // pred_fallthru
      _
    // Predicated region
    $region6: #{_ndl_ffn_impl.1} parent=1 // pred_check
      _
    $region7: #{_ndl_ffn_impl.1} parent=1 // pred_check_branch
      %13 = sbr.rel (0) target = $region9
    $region8: #{_ndl_ffn_impl.1} parent=1 // pred_region
      _
    $region9: #{_ndl_ffn_impl.1} parent=1 // pred_fallthru
      _
    // Predicated region
    $region10: #{_ndl_ffn_impl.1} parent=1 // pred_check
      _
    $region11: #{_ndl_ffn_impl.1} parent=1 // pred_check_branch
      %15 = sbr.rel (0) target = $region13
    $region12: #{_ndl_ffn_impl.1} parent=1 // pred_region
      _
    $region13: #{_ndl_ffn_impl.1} parent=1 // pred_fallthru
      _
    // Predicated region
    $region14: #{_ndl_ffn_impl.1} parent=1 // pred_check
      _
    $region15: #{_ndl_ffn_impl.1} parent=1 // pred_check_branch
      %17 = sbr.rel (0) target = $region17
    $region16: #{_ndl_ffn_impl.1} parent=1 // pred_region
      _
    $region17: #{_ndl_ffn_impl.1} parent=1 // pred_fallthru
      _
    %v18 = vld [vmem:[%s0] sm:$0xff]
    %v19 = vld [vmem:[%s0 + $0x8] sm:$0xff]
    %v20 = vld [vmem:[%s1] sm:$0xff]
    %v21 = vld [vmem:[%s1 + $0x8] sm:$0xff]
    %v22 = vld [vmem:[%s1 + $0x10] sm:$0xff]
    %v23 = vld [vmem:[%s1 + $0x18] sm:$0xff]
    %v24 = vld [vmem:[%s2] sm:$0xff]
    %v25 = vld [vmem:[%s2 + $0x8] sm:$0xff]
    %v26 = vld [vmem:[%s2 + $0x10] sm:$0xff]
    %v27 = vld [vmem:[%s2 + $0x18] sm:$0xff]
    %vm28 = vcmask 261120
    %v30 = vsel %vm28, %v18, 0
    %v33 = vsel %vm28, %v19, 0
    %35 = vmatprep.subr.mxu0 0.0
    %36 = vmatpush1.msra.mxu0 %v20
    %37 = vmatprep.subr.mxu0 0.0
    %38 = vmatpush1.msra.mxu0 %v21
    %39 = vmatprep.subr.mxu0 0.0
    %40 = vmatpush1.msra.mxu0 %v22
    %41 = vmatprep.subr.mxu0 0.0
    %42 = vmatpush1.msra.mxu0 %v23
    %43 = vmatprep.subr.mxu0 0.0
    %44 = vmatpush1.msra.mxu0 0.0
    %45 = vmatprep.subr.mxu0 0.0
    %46 = vmatpush1.msra.mxu0 0.0
    %47 = vmatprep.subr.mxu0 0.0
    %48 = vmatpush1.msra.mxu0 0.0
    %49 = vmatprep.subr.mxu0 0.0
    %50 = vmatpush1.msra.mxu0 0.0
    %51 = vmatprep.subr.mxu0 0.0
    %52 = vmatpush1.msra.mxu0 0.0
    %53 = vmatprep.subr.mxu0 0.0
    %54 = vmatpush1.msra.mxu0 0.0
    %55 = vmatprep.subr.mxu0 0.0
    %56 = vmatpush1.msra.mxu0 0.0
    %57 = vmatprep.subr.mxu0 0.0
    %58 = vmatpush1.msra.mxu0 0.0
    %59 = vmatprep.subr.mxu0 0.0
    %60 = vmatpush1.msra.mxu0 0.0
    %61 = vmatprep.subr.mxu0 0.0
    %62 = vmatpush1.msra.mxu0 0.0
    %63 = vmatprep.subr.mxu0 0.0
    %64 = vmatpush1.msra.mxu0 0.0
    %65 = vmatprep.subr.mxu0 0.0
    %66 = vmatpush1.msra.mxu0 0.0
    %67 = vmatprep.subr.mxu0 0.0
    %68 = vmatpush1.msra.mxu0 0.0
    %69 = vmatprep.subr.mxu0 0.0
    %70 = vmatpush1.msra.mxu0 0.0
    %71 = vmatprep.subr.mxu0 0.0
    %72 = vmatpush1.msra.mxu0 0.0
    %73 = vmatprep.subr.mxu0 0.0
    %74 = vmatpush1.msra.mxu0 0.0
    %75 = vmatprep.subr.mxu0 0.0
    %76 = vmatpush1.msra.mxu0 0.0
    %77 = vmatprep.subr.mxu0 0.0
    %78 = vmatpush1.msra.mxu0 0.0
    %79 = vmatprep.subr.mxu0 0.0
    %80 = vmatpush1.msra.mxu0 0.0
    %81 = vmatprep.subr.mxu0 0.0
    %82 = vmatpush1.msra.mxu0 0.0
    %83 = vmatprep.subr.mxu0 0.0
    %84 = vmatpush1.msra.mxu0 0.0
    %85 = vmatprep.subr.mxu0 0.0
    %86 = vmatpush1.msra.mxu0 0.0
    %87 = vmatprep.subr.mxu0 0.0
    %88 = vmatpush1.msra.mxu0 0.0
    %89 = vmatprep.subr.mxu0 0.0
    %90 = vmatpush1.msra.mxu0 0.0
    %91 = vmatprep.subr.mxu0 0.0
    %92 = vmatpush1.msra.mxu0 0.0
    %93 = vmatprep.subr.mxu0 0.0
    %94 = vmatpush1.msra.mxu0 0.0
    %95 = vmatprep.subr.mxu0 0.0
    %96 = vmatpush1.msra.mxu0 0.0
    %97 = vmatprep.subr.mxu0 0.0
    %98 = vmatpush1.msra.mxu0 0.0
    %99 = vmatprep.mubr.f32.mxu0 0.0
    %100 = vmatmul.mubr.f32.gmra.mrb[0].mxu0 %v30
    %v101 = vpop.f32.mrb[0].mxu0
    %v102 = vadd.f32 0.0, %v101
    %v103 = vpop.f32.mrb[0].mxu0
    %104 = vmatprep.mubr.f32.mxu0 0.0
    %105 = vmatmul.mubr.f32.gmra.mrb[0].mxu0 %v33
    %v106 = vpop.f32.mrb[0].mxu0
    %v107 = vadd.f32 0.0, %v106
    %v108 = vpop.f32.mrb[0].mxu0
    %109 = vdwg.mxu0
    %110 = vmatprep.subr.mxu0 0.0
    %111 = vmatpush1.msra.mxu0 %v24
    %112 = vmatprep.subr.mxu0 0.0
    %113 = vmatpush1.msra.mxu0 %v25
    %114 = vmatprep.subr.mxu0 0.0
    %115 = vmatpush1.msra.mxu0 %v26
    %116 = vmatprep.subr.mxu0 0.0
    %117 = vmatpush1.msra.mxu0 %v27
    %118 = vmatprep.subr.mxu0 0.0
    %119 = vmatpush1.msra.mxu0 0.0
    %120 = vmatprep.subr.mxu0 0.0
    %121 = vmatpush1.msra.mxu0 0.0
    %122 = vmatprep.subr.mxu0 0.0
    %123 = vmatpush1.msra.mxu0 0.0
    %124 = vmatprep.subr.mxu0 0.0
    %125 = vmatpush1.msra.mxu0 0.0
    %126 = vmatprep.subr.mxu0 0.0
    %127 = vmatpush1.msra.mxu0 0.0
    %128 = vmatprep.subr.mxu0 0.0
    %129 = vmatpush1.msra.mxu0 0.0
    %130 = vmatprep.subr.mxu0 0.0
    %131 = vmatpush1.msra.mxu0 0.0
    %132 = vmatprep.subr.mxu0 0.0
    %133 = vmatpush1.msra.mxu0 0.0
    %134 = vmatprep.subr.mxu0 0.0
    %135 = vmatpush1.msra.mxu0 0.0
    %136 = vmatprep.subr.mxu0 0.0
    %137 = vmatpush1.msra.mxu0 0.0
    %138 = vmatprep.subr.mxu0 0.0
    %139 = vmatpush1.msra.mxu0 0.0
    %140 = vmatprep.subr.mxu0 0.0
    %141 = vmatpush1.msra.mxu0 0.0
    %142 = vmatprep.subr.mxu0 0.0
    %143 = vmatpush1.msra.mxu0 0.0
    %144 = vmatprep.subr.mxu0 0.0
    %145 = vmatpush1.msra.mxu0 0.0
    %146 = vmatprep.subr.mxu0 0.0
    %147 = vmatpush1.msra.mxu0 0.0
    %148 = vmatprep.subr.mxu0 0.0
    %149 = vmatpush1.msra.mxu0 0.0
    %150 = vmatprep.subr.mxu0 0.0
    %151 = vmatpush1.msra.mxu0 0.0
    %152 = vmatprep.subr.mxu0 0.0
    %153 = vmatpush1.msra.mxu0 0.0
    %154 = vmatprep.subr.mxu0 0.0
    %155 = vmatpush1.msra.mxu0 0.0
    %156 = vmatprep.subr.mxu0 0.0
    %157 = vmatpush1.msra.mxu0 0.0
    %158 = vmatprep.subr.mxu0 0.0
    %159 = vmatpush1.msra.mxu0 0.0
    %160 = vmatprep.subr.mxu0 0.0
    %161 = vmatpush1.msra.mxu0 0.0
    %162 = vmatprep.subr.mxu0 0.0
    %163 = vmatpush1.msra.mxu0 0.0
    %164 = vmatprep.subr.mxu0 0.0
    %165 = vmatpush1.msra.mxu0 0.0
    %166 = vmatprep.subr.mxu0 0.0
    %167 = vmatpush1.msra.mxu0 0.0
    %168 = vmatprep.subr.mxu0 0.0
    %169 = vmatpush1.msra.mxu0 0.0
    %170 = vmatprep.subr.mxu0 0.0
    %171 = vmatpush1.msra.mxu0 0.0
    %172 = vmatprep.subr.mxu0 0.0
    %173 = vmatpush1.msra.mxu0 0.0
    %174 = vmatprep.mubr.f32.mxu0 0.0
    %175 = vmatmul.mubr.f32.gmra.mrb[0].mxu0 %v30
    %v176 = vpop.f32.mrb[0].mxu0
    %v177 = vadd.f32 0.0, %v176
    %v178 = vpop.f32.mrb[0].mxu0
    %179 = vmatprep.mubr.f32.mxu0 0.0
    %180 = vmatmul.mubr.f32.gmra.mrb[0].mxu0 %v33
    %v181 = vpop.f32.mrb[0].mxu0
    %v182 = vadd.f32 0.0, %v181
    %v183 = vpop.f32.mrb[0].mxu0
    %184 = vdwg.mxu0
    %v185 = vxor.u32 %v177, 2147483648
    %v186 = vxor.u32 %v182, 2147483648
    %v187 = vmul.f32 %v185, 1.442695
    %v188 = vpow.pop %v187
    %v189 = vmul.f32 %v186, 1.442695
    %v190 = vpow.pop %v189
    %v191 = vadd.f32 %v188, 1.0
    %v192 = vadd.f32 %v190, 1.0
    %v193 = vrcp.pop %v191
    %v194 = vmul.f32 1.0, %v193
    %v195 = vrcp.pop %v192
    %v196 = vmul.f32 1.0, %v195
    %v197 = vmul.f32 %v177, %v194
    %v198 = vmul.f32 %v182, %v196
    %v199 = vmul.f32 %v102, %v197
    %v200 = vmul.f32 %v107, %v198
    %v201 = vld [vmem:[%s3] sm:$0xff]
    %v202 = vld [vmem:[%s3 + $0x8] sm:$0xff]
    %v203 = vld [vmem:[%s3 + $0x10] sm:$0xff]
    %v204 = vld [vmem:[%s3 + $0x18] sm:$0xff]
    %v205 = vld [vmem:[%s3 + $0x20] sm:$0xff]
    %v206 = vld [vmem:[%s3 + $0x28] sm:$0xff]
    %v207 = vld [vmem:[%s3 + $0x30] sm:$0xff]
    %v208 = vld [vmem:[%s3 + $0x38] sm:$0xff]
    %vm209 = vcmask 523264
    %v211 = vsel %vm209, %v199, 0
    %v214 = vsel %vm209, %v200, 0
    %216 = vmatprep.subr.mxu0 0.0
    %217 = vmatpush1.msra.mxu0 %v201
    %218 = vmatprep.subr.mxu0 0.0
    %219 = vmatpush1.msra.mxu0 %v202
    %220 = vmatprep.subr.mxu0 0.0
    %221 = vmatpush1.msra.mxu0 %v203
    %222 = vmatprep.subr.mxu0 0.0
    %223 = vmatpush1.msra.mxu0 %v204
    %224 = vmatprep.subr.mxu0 0.0
    %225 = vmatpush1.msra.mxu0 %v205
    %226 = vmatprep.subr.mxu0 0.0
    %227 = vmatpush1.msra.mxu0 %v206
    %228 = vmatprep.subr.mxu0 0.0
    %229 = vmatpush1.msra.mxu0 %v207
    %230 = vmatprep.subr.mxu0 0.0
    %231 = vmatpush1.msra.mxu0 %v208
    %232 = vmatprep.subr.mxu0 0.0
    %233 = vmatpush1.msra.mxu0 0.0
    %234 = vmatprep.subr.mxu0 0.0
    %235 = vmatpush1.msra.mxu0 0.0
    %236 = vmatprep.subr.mxu0 0.0
    %237 = vmatpush1.msra.mxu0 0.0
    %238 = vmatprep.subr.mxu0 0.0
    %239 = vmatpush1.msra.mxu0 0.0
    %240 = vmatprep.subr.mxu0 0.0
    %241 = vmatpush1.msra.mxu0 0.0
    %242 = vmatprep.subr.mxu0 0.0
    %243 = vmatpush1.msra.mxu0 0.0
    %244 = vmatprep.subr.mxu0 0.0
    %245 = vmatpush1.msra.mxu0 0.0
    %246 = vmatprep.subr.mxu0 0.0
    %247 = vmatpush1.msra.mxu0 0.0
    %248 = vmatprep.subr.mxu0 0.0
    %249 = vmatpush1.msra.mxu0 0.0
    %250 = vmatprep.subr.mxu0 0.0
    %251 = vmatpush1.msra.mxu0 0.0
    %252 = vmatprep.subr.mxu0 0.0
    %253 = vmatpush1.msra.mxu0 0.0
    %254 = vmatprep.subr.mxu0 0.0
    %255 = vmatpush1.msra.mxu0 0.0
    %256 = vmatprep.subr.mxu0 0.0
    %257 = vmatpush1.msra.mxu0 0.0
    %258 = vmatprep.subr.mxu0 0.0
    %259 = vmatpush1.msra.mxu0 0.0
    %260 = vmatprep.subr.mxu0 0.0
    %261 = vmatpush1.msra.mxu0 0.0
    %262 = vmatprep.subr.mxu0 0.0
    %263 = vmatpush1.msra.mxu0 0.0
    %264 = vmatprep.subr.mxu0 0.0
    %265 = vmatpush1.msra.mxu0 0.0
    %266 = vmatprep.subr.mxu0 0.0
    %267 = vmatpush1.msra.mxu0 0.0
    %268 = vmatprep.subr.mxu0 0.0
    %269 = vmatpush1.msra.mxu0 0.0
    %270 = vmatprep.subr.mxu0 0.0
    %271 = vmatpush1.msra.mxu0 0.0
    %272 = vmatprep.subr.mxu0 0.0
    %273 = vmatpush1.msra.mxu0 0.0
    %274 = vmatprep.subr.mxu0 0.0
    %275 = vmatpush1.msra.mxu0 0.0
    %276 = vmatprep.subr.mxu0 0.0
    %277 = vmatpush1.msra.mxu0 0.0
    %278 = vmatprep.subr.mxu0 0.0
    %279 = vmatpush1.msra.mxu0 0.0
    %280 = vmatprep.mubr.f32.mxu0 0.0
    %281 = vmatmul.mubr.f32.gmra.mrb[0].mxu0 %v211
    %v282 = vpop.f32.mrb[0].mxu0
    %v283 = vadd.f32 0.0, %v282
    %v284 = vpop.f32.mrb[0].mxu0
    %285 = vmatprep.mubr.f32.mxu0 0.0
    %286 = vmatmul.mubr.f32.gmra.mrb[0].mxu0 %v214
    %v287 = vpop.f32.mrb[0].mxu0
    %v288 = vadd.f32 0.0, %v287
    %v289 = vpop.f32.mrb[0].mxu0
    %290 = vdwg.mxu0
    %291 = vst.msk [vmem:[#allocation2] sm:$0xff] %vm28, %v283
    %292 = vst.msk [vmem:[#allocation2 + $0x8] sm:$0xff] %vm28, %v288
    // Predicated region
    $region18: #{_ndl_ffn_impl.1} parent=1 // pred_check
      _
    $region19: #{_ndl_ffn_impl.1} parent=1 // pred_check_branch
      %294 = sbr.rel (0) target = $region21
    $region20: #{_ndl_ffn_impl.1} parent=1 // pred_region
      %s296 = ssub.s32 256, 256
      %297 = vsyncadd [#allocation3], %s296
      %s298 = sshll.u32 [#allocation2], 4
      %s299 = int_to_ptr.vmem [resolvable:$true] %s298
      %304 = dma.vmem_to_hbm [thread:$0]  %s299, 256, %s4, [#allocation3], 128, 128, 8
    $region21: #{_ndl_ffn_impl.1} parent=1 // pred_fallthru
      _
    // Predicated region
    $region22: #{_ndl_ffn_impl.1} parent=1 // pred_check
      _
    $region23: #{_ndl_ffn_impl.1} parent=1 // pred_check_branch
      %306 = sbr.rel (0) target = $region25
    $region24: #{_ndl_ffn_impl.1} parent=1 // pred_region
      %307 = dma.done [#allocation3], 256
    $region25: #{_ndl_ffn_impl.1} parent=1 // pred_fallthru
      _
    %308 = vsyncpa [#allocation3], 1

</llo_original>
